<compile_context>
chip_gen: v7x
topology: tpu7x:2x2x1
jax: 0.10.0
libtpu: 0.0.40
codegen_flags: <defaults>
</compile_context>

<pallas_src>
import functools

import jax
import jax.numpy as jnp
import numpy as np
from jax import lax
from jax.experimental import pallas as pl
from jax.experimental.pallas import tpu as pltpu


def _upsampling_kernel(xd_ref, g_ref, ub_ref, f_ref,
                       w1_ref, s1_ref, b1_ref,
                       w2_ref, s2_ref, b2_ref,
                       o_ref, *, H):
    """One batch element per grid step. All arrays are lane-dense rows.

    xd_ref : (1, H, 2*Ws*Cin)    bf16  phase-split (and reflection-mapped) x rows
    g_ref  : (2*Ws*Cin, W*Chalf) bf16  expanded ConvTranspose2d weight
    ub_ref : (1, W*Chalf)        f32   ConvTranspose bias, tiled over W
    f_ref  : (1, H+2, W*Chalf)   bf16  skip feature, zero row added top/bottom
    w*_ref : (3*W*Cin_l, W*Co_l) bf16  banded block-Toeplitz 3x3 conv weights
    s*,b*  : (1, W*Co_l)         f32   folded BatchNorm scale / bias, tiled
    o_ref  : (1, H, W*Cout)      f32
    """
    # ---- ConvTranspose2d(2, 2, stride=2) as a single matmul ----
    up = jnp.dot(xd_ref[0], g_ref[...], preferred_element_type=jnp.float32)
    up = (up + ub_ref[...]).astype(f_ref.dtype)                   # (H, W*Chalf)

    # ---- concat([feature, up], channel) in the lane-dense layout ----
    zu = jnp.zeros((1, up.shape[1]), up.dtype)
    up_p = jnp.concatenate([zu, up, zu], axis=0)                  # (H+2, W*Chalf)
    cat = jnp.concatenate([f_ref[0], up_p], axis=1)               # (H+2, W*Ccat)

    def conv_bn_relu(src, w_ref, s_ref, b_ref):
        # 3x3 conv (pad=1) == ONE matmul against a banded block-Toeplitz weight.
        a = jnp.concatenate([src[0:H], src[1:H + 1], src[2:H + 2]], axis=1)
        acc = jnp.dot(a, w_ref[...], preferred_element_type=jnp.float32)
        return jnp.maximum(acc * s_ref[...] + b_ref[...], 0.0)    # BN (folded) + ReLU

    y1 = conv_bn_relu(cat, w1_ref, s1_ref, b1_ref)                # (H, W*Cmid) f32
    y1 = y1.astype(w2_ref.dtype)
    zy = jnp.zeros((1, y1.shape[1]), y1.dtype)
    y1p = jnp.concatenate([zy, y1, zy], axis=0)                   # (H+2, W*Cmid)
    y2 = conv_bn_relu(y1p, w2_ref, s2_ref, b2_ref)                # (H, W*Cout)

    o_ref[0] = y2.astype(o_ref.dtype)                             # 128-lane dense store


def _reflect_index(i, length):
    """PyTorch ReflectionPad index mapping (no edge repeat)."""
    if length == 1:
        return 0
    period = 2 * (length - 1)
    i = i % period
    return i if i < length else period - i


def _banded_conv3_weights(w_hwio, W, in_groups=1):
    """Fold a 3x3 (pad=1) conv into a banded matmul weight for lane-dense rows.

    Input-row lane layout: [g, q, c] (channel group, image column, channel).
    Matmul K layout: [ky, g, q, c]; output lane layout: [w, co].
    Returns (3 * W * Cin, W * Cout) in f32 (caller casts to bf16).
    """
    kh, kw, cin, cout = w_hwio.shape
    assert kh == 3 and kw == 3
    cg = cin // in_groups
    ind = np.zeros((3, W, W), np.float32)          # ind[kx, q, w] = [q == w + kx - 1]
    for kx in range(3):
        for w in range(W):
            q = w + kx - 1
            if 0 <= q < W:
                ind[kx, q, w] = 1.0
    wg = w_hwio.astype(jnp.float32).reshape(3, 3, in_groups, cg, cout)
    band = jnp.einsum("yxgco,xqw->ygqcwo", wg, jnp.asarray(ind))
    return band.reshape(3 * W * cin, W * cout)


def upsampling_forward(x_nchw, feature_nchw, params):
    """Pallas implementation of UpSampling.forward. Inputs/outputs are NCHW."""
    N, Cin, Hs, Ws = x_nchw.shape
    Nf, Chalf, Hf, Wf = feature_nchw.shape
    assert Nf == N and Chalf * 2 == Cin
    # The module only (reflection-)pads the height of the upsampled map.
    assert Wf == 2 * Ws, "widths must match after 2x upsampling"
    top = (Wf - 2 * Ws) // 2                      # module: y_pad // 2 (width diff!)
    bottom = (Hf - 2 * Hs) // 2                   # module: x_pad // 2 (height diff)
    assert 2 * Hs + top + bottom == Hf, "padded upsample must match feature height"
    H, W = Hf, Wf
    Ccat = Cin
    Cmid = params["w1"].shape[-1]
    Cout = params["w2"].shape[-1]
    f32, bf16 = jnp.float32, jnp.bfloat16

    # --- ConvTranspose as a matmul: phase-split + reflection-mapped input rows.
    src = [_reflect_index(r - top, 2 * Hs) for r in range(H)]
    h_idx = np.asarray([s // 2 for s in src], np.int32)   # source x row
    a_idx = np.asarray([s % 2 for s in src], np.int32)    # output-row phase
    x_rows = jnp.transpose(x_nchw, (0, 2, 3, 1)).astype(f32).reshape(N, Hs, Ws * Cin)
    x_rows = x_rows[:, h_idx, :]                                      # (N, H, Ws*Cin)
    a_col = jnp.asarray(a_idx)[None, :, None]
    xd = jnp.concatenate([jnp.where(a_col == 0, x_rows, 0.0),
                          jnp.where(a_col == 1, x_rows, 0.0)], axis=-1).astype(bf16)

    wt = params["wt"].astype(f32)                                     # (Cin,Chalf,2,2)
    g = jnp.einsum("vw,idab->aviwbd", jnp.eye(Ws, dtype=f32), wt)
    g = g.reshape(2 * Ws * Cin, W * Chalf).astype(bf16)
    ub = jnp.tile(params["bt"].astype(f32), W).reshape(1, W * Chalf)

    # --- skip feature: lane-dense rows, zero-padded by one row top/bottom.
    f_dense = jnp.transpose(feature_nchw, (0, 2, 3, 1)).astype(f32).reshape(N, H, W * Chalf)
    f_dense = jnp.pad(f_dense, ((0, 0), (1, 1), (0, 0))).astype(bf16)

    # --- banded (block-Toeplitz) conv weights + tiled BN scale/bias.
    w1b = _banded_conv3_weights(params["w1"], W, in_groups=2).astype(bf16)
    w2b = _banded_conv3_weights(params["w2"], W, in_groups=1).astype(bf16)
    s1w = jnp.tile(params["scale1"].astype(f32), W).reshape(1, W * Cmid)
    b1w = jnp.tile(params["bias1"].astype(f32), W).reshape(1, W * Cmid)
    s2w = jnp.tile(params["scale2"].astype(f32), W).reshape(1, W * Cout)
    b2w = jnp.tile(params["bias2"].astype(f32), W).reshape(1, W * Cout)

    kernel = functools.partial(_upsampling_kernel, H=H)
    out = pl.pallas_call(
        kernel,
        out_shape=jax.ShapeDtypeStruct((N, H, W * Cout), f32),
        grid_spec=pltpu.PrefetchScalarGridSpec(
            num_scalar_prefetch=0,
            grid=(N,),
            in_specs=[
                pl.BlockSpec((1, H, 2 * Ws * Cin), lambda n: (n, 0, 0)),
                pl.BlockSpec((2 * Ws * Cin, W * Chalf), lambda n: (0, 0)),
                pl.BlockSpec((1, W * Chalf), lambda n: (0, 0)),
                pl.BlockSpec((1, H + 2, W * Chalf), lambda n: (n, 0, 0)),
                pl.BlockSpec((3 * W * Ccat, W * Cmid), lambda n: (0, 0)),
                pl.BlockSpec((1, W * Cmid), lambda n: (0, 0)),
                pl.BlockSpec((1, W * Cmid), lambda n: (0, 0)),
                pl.BlockSpec((3 * W * Cmid, W * Cout), lambda n: (0, 0)),
                pl.BlockSpec((1, W * Cout), lambda n: (0, 0)),
                pl.BlockSpec((1, W * Cout), lambda n: (0, 0)),
            ],
            out_specs=pl.BlockSpec((1, H, W * Cout), lambda n: (n, 0, 0)),
        ),
        compiler_params=pltpu.CompilerParams(dimension_semantics=("parallel",)),
    )(xd, g, ub, f_dense, w1b, s1w, b1w, w2b, s2w, b2w)

    return jnp.transpose(out.reshape(N, H, W, Cout), (0, 3, 1, 2))    # back to NCHW


def reference_forward(x_nchw, feature_nchw, params):
    """Pure-JAX (f32) reference with the same eval-mode BN semantics."""
    N, Cin, Hs, Ws = x_nchw.shape
    _, Chalf, Hf, Wf = feature_nchw.shape
    x = jnp.transpose(x_nchw, (0, 2, 3, 1))
    up = jnp.einsum("nhwc,cdab->nhawbd", x, params["wt"])
    up = up.reshape(N, 2 * Hs, 2 * Ws, Chalf) + params["bt"]
    top = (Wf - 2 * Ws) // 2
    bottom = (Hf - 2 * Hs) // 2
    if top or bottom:
        up = jnp.pad(up, ((0, 0), (top, bottom), (0, 0), (0, 0)), mode="reflect")
    y = jnp.concatenate([jnp.transpose(feature_nchw, (0, 2, 3, 1)), up], axis=-1)

    def conv_bn_relu(z, w, s, b):
        z = lax.conv_general_dilated(z, w, (1, 1), ((1, 1), (1, 1)),
                                     dimension_numbers=("NHWC", "HWIO", "NHWC"))
        return jnp.maximum(z * s + b, 0.0)

    y = conv_bn_relu(y, params["w1"], params["scale1"], params["bias1"])
    y = conv_bn_relu(y, params["w2"], params["scale2"], params["bias2"])
    return jnp.transpose(y, (0, 3, 1, 2))


if __name__ == "__main__":
    # UpSampling(in_ch=8, out_ch=8): x (2, 8, 8, 8), skip feature (2, 4, 16, 16).
    N = 2
    in_ch, out_ch = 8, 8
    Hs = Ws = 8
    Chalf = in_ch // 2
    eps = 1e-5

    key = jax.random.PRNGKey(0)
    k_x, k_f, k_wt, k_w1, k_w2 = jax.random.split(key, 5)

    x = jax.random.normal(k_x, (N, in_ch, Hs, Ws), jnp.float32)
    feature = jax.random.normal(k_f, (N, Chalf, 2 * Hs, 2 * Ws), jnp.float32)

    # ConvTranspose2d weight (in_ch, in_ch//2, 2, 2) + bias; 3x3 conv weights in HWIO.
    wt = jax.random.normal(k_wt, (in_ch, Chalf, 2, 2), jnp.float32) * (1.0 / (4 * in_ch)) ** 0.5
    bt = 0.01 * jnp.arange(Chalf, dtype=jnp.float32)
    w1 = jax.random.normal(k_w1, (3, 3, in_ch, out_ch), jnp.float32) * (2.0 / (9 * in_ch)) ** 0.5
    w2 = jax.random.normal(k_w2, (3, 3, out_ch, out_ch), jnp.float32) * (2.0 / (9 * out_ch)) ** 0.5

    # BatchNorm (eval): running_mean=0, running_var=1, non-trivial gamma/beta.
    gamma1 = 1.0 + 0.05 * jnp.arange(out_ch, dtype=jnp.float32)
    beta1 = 0.02 * jnp.arange(out_ch, dtype=jnp.float32)
    gamma2 = 1.0 - 0.03 * jnp.arange(out_ch, dtype=jnp.float32)
    beta2 = -0.01 * jnp.arange(out_ch, dtype=jnp.float32)
    run_mean = jnp.zeros((out_ch,), jnp.float32)
    run_var = jnp.ones((out_ch,), jnp.float32)
    scale1 = gamma1 / jnp.sqrt(run_var + eps)
    bias1 = beta1 - run_mean * scale1
    scale2 = gamma2 / jnp.sqrt(run_var + eps)
    bias2 = beta2 - run_mean * scale2

    params = dict(wt=wt, bt=bt, w1=w1, w2=w2,
                  scale1=scale1, bias1=bias1, scale2=scale2, bias2=bias2)

    out = upsampling_forward(x, feature, params)
    out = jax.block_until_ready(out)
    assert out.shape == (N, out_ch, 2 * Hs, 2 * Ws), out.shape

    ref = reference_forward(x, feature, params)
    # bf16 MXU inputs (f32 accumulation) -> loose-but-safe tolerance vs f32 reference.
    np.testing.assert_allclose(np.asarray(out), np.asarray(ref), rtol=5e-2, atol=5e-2)

    print("KERNEL_OK")
</pallas_src>

<mosaic_0001>
module attributes {stable_mosaic.version = 11 : i64} {
  func.func @_upsampling_kernel(%arg0: i32, %arg1: memref<1x16x128xbf16, #tpu.memory_space<vmem>>, %arg2: memref<128x64xbf16, #tpu.memory_space<vmem>>, %arg3: memref<1x64xf32, #tpu.memory_space<vmem>>, %arg4: memref<1x18x64xbf16, #tpu.memory_space<vmem>>, %arg5: memref<384x128xbf16, #tpu.memory_space<vmem>>, %arg6: memref<1x128xf32, #tpu.memory_space<vmem>>, %arg7: memref<1x128xf32, #tpu.memory_space<vmem>>, %arg8: memref<384x128xbf16, #tpu.memory_space<vmem>>, %arg9: memref<1x128xf32, #tpu.memory_space<vmem>>, %arg10: memref<1x128xf32, #tpu.memory_space<vmem>>, %arg11: memref<1x16x128xf32, #tpu.memory_space<vmem>>) attributes {dimension_semantics = [#tpu.dimension_semantics<parallel>], iteration_bounds = array<i64: 2>, scalar_prefetch = 0 : i64, scratch_operands = 0 : i64, tpu.core_type = #tpu.core_type<tc>, window_params = [{transform_indices = @transform_0, window_bounds = array<i64: 1, 16, 128>}, {pipeline_mode = #tpu.pipeline_mode<synchronous>, transform_indices = @transform_1, window_bounds = array<i64: 128, 64>}, {pipeline_mode = #tpu.pipeline_mode<synchronous>, transform_indices = @transform_2, window_bounds = array<i64: 1, 64>}, {transform_indices = @transform_3, window_bounds = array<i64: 1, 18, 64>}, {pipeline_mode = #tpu.pipeline_mode<synchronous>, transform_indices = @transform_4, window_bounds = array<i64: 384, 128>}, {pipeline_mode = #tpu.pipeline_mode<synchronous>, transform_indices = @transform_5, window_bounds = array<i64: 1, 128>}, {pipeline_mode = #tpu.pipeline_mode<synchronous>, transform_indices = @transform_6, window_bounds = array<i64: 1, 128>}, {pipeline_mode = #tpu.pipeline_mode<synchronous>, transform_indices = @transform_7, window_bounds = array<i64: 384, 128>}, {pipeline_mode = #tpu.pipeline_mode<synchronous>, transform_indices = @transform_8, window_bounds = array<i64: 1, 128>}, {pipeline_mode = #tpu.pipeline_mode<synchronous>, transform_indices = @transform_9, window_bounds = array<i64: 1, 128>}, {transform_indices = @transform_10, window_bounds = array<i64: 1, 16, 128>}]} {
    %c0 = arith.constant 0 : index
    %c0_0 = arith.constant 0 : index
    %c0_1 = arith.constant 0 : index
    %0 = vector.load %arg1[%c0, %c0_0, %c0_1] : memref<1x16x128xbf16, #tpu.memory_space<vmem>>, vector<1x16x128xbf16>
    %1 = vector.shape_cast %0 : vector<1x16x128xbf16> to vector<16x128xbf16>
    %c0_2 = arith.constant 0 : index
    %c0_3 = arith.constant 0 : index
    %2 = vector.load %arg2[%c0_2, %c0_3] : memref<128x64xbf16, #tpu.memory_space<vmem>>, vector<128x64xbf16>
    %cst = arith.constant dense<0.000000e+00> : vector<16x64xf32>
    %3 = tpu.matmul %1, %2, %cst {dimension_numbers = #tpu.dot_dimension_numbers<[1], [0], [0], [1], [0, 0, 1, 1], [], []>} : vector<16x128xbf16>, vector<128x64xbf16>, vector<16x64xf32> -> vector<16x64xf32>
    %c0_4 = arith.constant 0 : index
    %c0_5 = arith.constant 0 : index
    %4 = vector.load %arg3[%c0_4, %c0_5] : memref<1x64xf32, #tpu.memory_space<vmem>>, vector<1x64xf32>
    %5 = vector.broadcast %4 : vector<1x64xf32> to vector<16x64xf32>
    %6 = arith.addf %3, %5 : vector<16x64xf32>
    %7 = arith.truncf %6 : vector<16x64xf32> to vector<16x64xbf16>
    %cst_6 = arith.constant 0.000000e+00 : bf16
    %8 = vector.broadcast %cst_6 : bf16 to vector<1x64xbf16>
    %9 = tpu.concatenate %8, %7, %8 in 0 : vector<1x64xbf16>, vector<16x64xbf16>, vector<1x64xbf16> -> vector<18x64xbf16>
    %c0_7 = arith.constant 0 : index
    %c0_8 = arith.constant 0 : index
    %c0_9 = arith.constant 0 : index
    %10 = vector.load %arg4[%c0_7, %c0_8, %c0_9] : memref<1x18x64xbf16, #tpu.memory_space<vmem>>, vector<1x18x64xbf16>
    %11 = vector.shape_cast %10 : vector<1x18x64xbf16> to vector<18x64xbf16>
    %12 = tpu.concatenate %11, %9 in 1 : vector<18x64xbf16>, vector<18x64xbf16> -> vector<18x128xbf16>
    %13 = vector.extract_strided_slice %12 {offsets = [0, 0], sizes = [16, 128], strides = [1, 1]} : vector<18x128xbf16> to vector<16x128xbf16>
    %14 = vector.extract_strided_slice %12 {offsets = [1, 0], sizes = [16, 128], strides = [1, 1]} : vector<18x128xbf16> to vector<16x128xbf16>
    %15 = vector.extract_strided_slice %12 {offsets = [2, 0], sizes = [16, 128], strides = [1, 1]} : vector<18x128xbf16> to vector<16x128xbf16>
    %16 = tpu.concatenate %13, %14, %15 in 1 : vector<16x128xbf16>, vector<16x128xbf16>, vector<16x128xbf16> -> vector<16x384xbf16>
    %c0_10 = arith.constant 0 : index
    %c0_11 = arith.constant 0 : index
    %17 = vector.load %arg5[%c0_10, %c0_11] : memref<384x128xbf16, #tpu.memory_space<vmem>>, vector<384x128xbf16>
    %cst_12 = arith.constant dense<0.000000e+00> : vector<16x128xf32>
    %18 = tpu.matmul %16, %17, %cst_12 {dimension_numbers = #tpu.dot_dimension_numbers<[1], [0], [0], [1], [0, 0, 1, 1], [], []>} : vector<16x384xbf16>, vector<384x128xbf16>, vector<16x128xf32> -> vector<16x128xf32>
    %c0_13 = arith.constant 0 : index
    %c0_14 = arith.constant 0 : index
    %19 = vector.load %arg6[%c0_13, %c0_14] : memref<1x128xf32, #tpu.memory_space<vmem>>, vector<1x128xf32>
    %20 = vector.broadcast %19 : vector<1x128xf32> to vector<16x128xf32>
    %21 = arith.mulf %18, %20 : vector<16x128xf32>
    %c0_15 = arith.constant 0 : index
    %c0_16 = arith.constant 0 : index
    %22 = vector.load %arg7[%c0_15, %c0_16] : memref<1x128xf32, #tpu.memory_space<vmem>>, vector<1x128xf32>
    %23 = vector.broadcast %22 : vector<1x128xf32> to vector<16x128xf32>
    %24 = arith.addf %21, %23 : vector<16x128xf32>
    %cst_17 = arith.constant 0.000000e+00 : f32
    %25 = vector.broadcast %cst_17 : f32 to vector<16x128xf32>
    %26 = arith.maximumf %24, %25 : vector<16x128xf32>
    %27 = arith.truncf %26 : vector<16x128xf32> to vector<16x128xbf16>
    %cst_18 = arith.constant 0.000000e+00 : bf16
    %28 = vector.broadcast %cst_18 : bf16 to vector<1x128xbf16>
    %29 = tpu.concatenate %28, %27, %28 in 0 : vector<1x128xbf16>, vector<16x128xbf16>, vector<1x128xbf16> -> vector<18x128xbf16>
    %30 = vector.extract_strided_slice %29 {offsets = [0, 0], sizes = [16, 128], strides = [1, 1]} : vector<18x128xbf16> to vector<16x128xbf16>
    %31 = vector.extract_strided_slice %29 {offsets = [1, 0], sizes = [16, 128], strides = [1, 1]} : vector<18x128xbf16> to vector<16x128xbf16>
    %32 = vector.extract_strided_slice %29 {offsets = [2, 0], sizes = [16, 128], strides = [1, 1]} : vector<18x128xbf16> to vector<16x128xbf16>
    %33 = tpu.concatenate %30, %31, %32 in 1 : vector<16x128xbf16>, vector<16x128xbf16>, vector<16x128xbf16> -> vector<16x384xbf16>
    %c0_19 = arith.constant 0 : index
    %c0_20 = arith.constant 0 : index
    %34 = vector.load %arg8[%c0_19, %c0_20] : memref<384x128xbf16, #tpu.memory_space<vmem>>, vector<384x128xbf16>
    %cst_21 = arith.constant dense<0.000000e+00> : vector<16x128xf32>
    %35 = tpu.matmul %33, %34, %cst_21 {dimension_numbers = #tpu.dot_dimension_numbers<[1], [0], [0], [1], [0, 0, 1, 1], [], []>} : vector<16x384xbf16>, vector<384x128xbf16>, vector<16x128xf32> -> vector<16x128xf32>
    %c0_22 = arith.constant 0 : index
    %c0_23 = arith.constant 0 : index
    %36 = vector.load %arg9[%c0_22, %c0_23] : memref<1x128xf32, #tpu.memory_space<vmem>>, vector<1x128xf32>
    %37 = vector.broadcast %36 : vector<1x128xf32> to vector<16x128xf32>
    %38 = arith.mulf %35, %37 : vector<16x128xf32>
    %c0_24 = arith.constant 0 : index
    %c0_25 = arith.constant 0 : index
    %39 = vector.load %arg10[%c0_24, %c0_25] : memref<1x128xf32, #tpu.memory_space<vmem>>, vector<1x128xf32>
    %40 = vector.broadcast %39 : vector<1x128xf32> to vector<16x128xf32>
    %41 = arith.addf %38, %40 : vector<16x128xf32>
    %cst_26 = arith.constant 0.000000e+00 : f32
    %42 = vector.broadcast %cst_26 : f32 to vector<16x128xf32>
    %43 = arith.maximumf %41, %42 : vector<16x128xf32>
    %c0_27 = arith.constant 0 : index
    %c0_28 = arith.constant 0 : index
    %c0_29 = arith.constant 0 : index
    %44 = vector.load %arg11[%c0_27, %c0_28, %c0_29] : memref<1x16x128xf32, #tpu.memory_space<vmem>>, vector<1x16x128xf32>
    %45 = vector.shape_cast %44 : vector<1x16x128xf32> to vector<16x128xf32>
    %46 = vector.shape_cast %43 : vector<16x128xf32> to vector<1x16x128xf32>
    tpu.vector_store %arg11[%c0_27, %c0_28, %c0_29], %46 {strides = array<i32>} : memref<1x16x128xf32, #tpu.memory_space<vmem>>, vector<1x16x128xf32>,
    return
  }
  func.func @transform_0(%arg0: i32) -> (i32, i32, i32) {
    %c0_i32 = arith.constant 0 : i32
    %c0_i32_0 = arith.constant 0 : i32
    %c0_i32_1 = arith.constant 0 : i32
    return %arg0, %c0_i32, %c0_i32_0 : i32, i32, i32
  }
  func.func @transform_1(%arg0: i32) -> (i32, i32) {
    %c0_i32 = arith.constant 0 : i32
    %c0_i32_0 = arith.constant 0 : i32
    %c0_i32_1 = arith.constant 0 : i32
    return %c0_i32, %c0_i32_0 : i32, i32
  }
  func.func @transform_2(%arg0: i32) -> (i32, i32) {
    %c0_i32 = arith.constant 0 : i32
    %c0_i32_0 = arith.constant 0 : i32
    %c0_i32_1 = arith.constant 0 : i32
    return %c0_i32, %c0_i32_0 : i32, i32
  }
  func.func @transform_3(%arg0: i32) -> (i32, i32, i32) {
    %c0_i32 = arith.constant 0 : i32
    %c0_i32_0 = arith.constant 0 : i32
    %c0_i32_1 = arith.constant 0 : i32
    return %arg0, %c0_i32, %c0_i32_0 : i32, i32, i32
  }
  func.func @transform_4(%arg0: i32) -> (i32, i32) {
    %c0_i32 = arith.constant 0 : i32
    %c0_i32_0 = arith.constant 0 : i32
    %c0_i32_1 = arith.constant 0 : i32
    return %c0_i32, %c0_i32_0 : i32, i32
  }
  func.func @transform_5(%arg0: i32) -> (i32, i32) {
    %c0_i32 = arith.constant 0 : i32
    %c0_i32_0 = arith.constant 0 : i32
    %c0_i32_1 = arith.constant 0 : i32
    return %c0_i32, %c0_i32_0 : i32, i32
  }
  func.func @transform_6(%arg0: i32) -> (i32, i32) {
    %c0_i32 = arith.constant 0 : i32
    %c0_i32_0 = arith.constant 0 : i32
    %c0_i32_1 = arith.constant 0 : i32
    return %c0_i32, %c0_i32_0 : i32, i32
  }
  func.func @transform_7(%arg0: i32) -> (i32, i32) {
    %c0_i32 = arith.constant 0 : i32
    %c0_i32_0 = arith.constant 0 : i32
    %c0_i32_1 = arith.constant 0 : i32
    return %c0_i32, %c0_i32_0 : i32, i32
  }
  func.func @transform_8(%arg0: i32) -> (i32, i32) {
    %c0_i32 = arith.constant 0 : i32
    %c0_i32_0 = arith.constant 0 : i32
    %c0_i32_1 = arith.constant 0 : i32
    return %c0_i32, %c0_i32_0 : i32, i32
  }
  func.func @transform_9(%arg0: i32) -> (i32, i32) {
    %c0_i32 = arith.constant 0 : i32
    %c0_i32_0 = arith.constant 0 : i32
    %c0_i32_1 = arith.constant 0 : i32
    return %c0_i32, %c0_i32_0 : i32, i32
  }
  func.func @transform_10(%arg0: i32) -> (i32, i32, i32) {
    %c0_i32 = arith.constant 0 : i32
    %c0_i32_0 = arith.constant 0 : i32
    %c0_i32_1 = arith.constant 0 : i32
    return %arg0, %c0_i32, %c0_i32_0 : i32, i32, i32
  }
}

</mosaic_0001>

<llo_original>
// kernel: tpu_custom_call.1
$region0: #{tpu_custom_call.1}
  #allocation0 [shape = 'u32[]', space=smem, size = 0x4, offset = 0x4, fixed_abs, tag = 'smem constant byte address 0x4 - core index']
  #allocation1 [shape = 'u32[144,128]{1,0:T(1,128)}', space=vmem, size = 0x12000, scoped, tag = 'internal scratch']
  %s0 = inlined_call_operand.vmem [shape: bf16[2,16,128], index: 0, kind: input, shape index: {}]
  %s1 = inlined_call_operand.vmem [shape: bf16[128,64], index: 1, kind: input, shape index: {}]
  %s2 = inlined_call_operand.vmem [shape: f32[1,64], index: 2, kind: input, shape index: {}]
  %s3 = inlined_call_operand.vmem [shape: bf16[2,18,64], index: 3, kind: input, shape index: {}]
  %s4 = inlined_call_operand.hbm [shape: bf16[384,128], index: 4, kind: input, shape index: {}]
  %s5 = inlined_call_operand.vmem [shape: f32[1,128], index: 5, kind: input, shape index: {}]
  %s6 = inlined_call_operand.vmem [shape: f32[1,128], index: 6, kind: input, shape index: {}]
  %s7 = inlined_call_operand.hbm [shape: bf16[384,128], index: 7, kind: input, shape index: {}]
  %s8 = inlined_call_operand.vmem [shape: f32[1,128], index: 8, kind: input, shape index: {}]
  %s9 = inlined_call_operand.vmem [shape: f32[1,128], index: 9, kind: input, shape index: {}]
  %s10 = inlined_call_operand.hbm [shape: f32[2,16,128], index: 10, kind: output, shape index: {}]
  %s11 = sld [smem:[#allocation0]]
  $region81: #{tpu_custom_call.1} parent=0
    _
  %s13 = ssub.s32 1, %s11
  %s14 = scalar_select 0, %s13, %s11
  $region1: #{tpu_custom_call.1} parent=0
    #allocation2 [shape = 'u8[98304]{0}', space=vmem, size = 0x18000, scoped, tag = 'input window, operand 4, single buffered']
    #allocation3 [shape = 's32[2]{0}', space=sflag, size = 0x8, scoped, tag = 'scoped memory for tpu_custom_call.1']
    #allocation4 [shape = 's32[2]{0}', space=sflag, size = 0x8, scoped, tag = 'scoped memory for tpu_custom_call.1']
    #allocation5 [shape = 'u8[98304]{0}', space=vmem, size = 0x18000, scoped, tag = 'input window, operand 7, single buffered']
    #allocation6 [shape = 's32[1]{0}', space=sflag, size = 0x4, scoped, tag = 'scoped memory for tpu_custom_call.1']
    #allocation7 [shape = 'u8[16384]{0}', space=vmem, size = 0x4000, scoped, tag = 'output window, operand 0']
    %15 = vsyncpa [#allocation3], 0
    %16 = vsyncpa [#allocation6], 0
    %17 = vsyncpa [#allocation4], 0
    %s18 = scalar_lea.sflag [#allocation4], 1
    %19 = vsyncpa %s18, 0
    loop: start=0, step=1, limit=4
    $region2: #{tpu_custom_call.1} parent=1 // loop_pre_header
      _
    $region3: #{tpu_custom_call.1} parent=1 // loop_header
      %s21 = sphi 0, %s25
      %p22 = scmp.ge.s32.totalorder %s21, 4
      %s31 = sphi 0, %s33
      %s34 = sphi 0, %s31
      %s35 = sphi 0, %s34
      %s51 = sphi 0, %s35
      %s55 = sphi 0, %s55
      %s57 = sphi 0, %s55
      %s58 = sphi 0, %s57
      %s72 = sphi 0, %s58
      %s76 = sphi 0, %s76
      %s78 = sphi 0, %s76
      %s79 = sphi 0, %s78
      %s93 = sphi 0, %s79
      %s99 = sphi 0, %s101
      %s102 = sphi 0, %s99
      %s103 = sphi 0, %s102
      %s119 = sphi 0, %s103
      %s123 = sphi 0, %s123
      %s125 = sphi 0, %s123
      %s126 = sphi 0, %s125
      %s140 = sphi 0, %s126
      %s144 = sphi 0, %s144
      %s146 = sphi 0, %s144
      %s147 = sphi 0, %s146
      %s161 = sphi 0, %s147
      %s165 = sphi 0, %s165
      %s167 = sphi 0, %s165
      %s168 = sphi 0, %s167
      %s182 = sphi 0, %s168
      %s186 = sphi 0, %s186
      %s188 = sphi 0, %s186
      %s189 = sphi 0, %s188
      %s203 = sphi 0, %s189
      %s207 = sphi 0, %s207
      %s209 = sphi 0, %s207
      %s210 = sphi 0, %s209
      %s224 = sphi 0, %s210
      %s228 = sphi 0, %s228
      %s230 = sphi 0, %s228
      %s231 = sphi 0, %s230
      %s245 = sphi 0, %s231
      %s251 = sphi 0, %s253
      %s254 = sphi 0, %s251
      %s255 = sphi 0, %s254
      %s271 = sphi 0, %s255
    $region4: #{tpu_custom_call.1} parent=1 // loop_header_branch
      %24 = sbr.rel (%p22) target = $region8
    $region5: #{tpu_custom_call.1} parent=1 // loop_body
      %s26 = ssub.s32 %s21, 1
      %s27 = ssub.s32 %s21, 2
      %s28 = sadd.s32 %s21, 1
      %s29 = ssub.s32 %s21, %s28
      %p30 = scmp.eq.s32.totalorder %s29, 0
      %s32 = sadd.s32 %s31, 1
      %s33 = scalar_select %p30, %s31, %s32
      %p36 = pneg %p30
      %p37 = scmp.eq.s32.totalorder %s21, 1
      %p38 = por %p36, %p37
      %p39 = scmp.ne.s32.totalorder %s31, %s34
      %p40 = scmp.eq.s32.totalorder %s21, 0
      %p41 = por %p39, %p40
      %p42 = scmp.ne.s32.totalorder %s31, %s34
      %p43 = scmp.eq.s32.totalorder %s26, 1
      %p44 = por %p42, %p43
      %p45 = scmp.ne.s32.totalorder %s34, %s35
      %p46 = scmp.eq.s32.totalorder %s26, 0
      %p47 = por %p45, %p46
      %p48 = scmp.ne.s32.totalorder %s34, %s35
      %p49 = scmp.eq.s32.totalorder %s27, 1
      %p50 = por %p48, %p49
      %p52 = scmp.ne.s32.totalorder %s35, %s51
      %p53 = scmp.eq.s32.totalorder %s27, 0
      %p54 = por %p52, %p53
      %s56 = sadd.s32 %s55, 1
      %p59 = scmp.eq.s32.totalorder %s21, 1
      %p60 = scmp.ne.s32.totalorder %s55, %s57
      %p61 = scmp.eq.s32.totalorder %s21, 0
      %p62 = por %p60, %p61
      %p63 = scmp.ne.s32.totalorder %s55, %s57
      %p64 = scmp.eq.s32.totalorder %s26, 1
      %p65 = por %p63, %p64
      %p66 = scmp.ne.s32.totalorder %s57, %s58
      %p67 = scmp.eq.s32.totalorder %s26, 0
      %p68 = por %p66, %p67
      %p69 = scmp.ne.s32.totalorder %s57, %s58
      %p70 = scmp.eq.s32.totalorder %s27, 1
      %p71 = por %p69, %p70
      %p73 = scmp.ne.s32.totalorder %s58, %s72
      %p74 = scmp.eq.s32.totalorder %s27, 0
      %p75 = por %p73, %p74
      %s77 = sadd.s32 %s76, 1
      %p80 = scmp.eq.s32.totalorder %s21, 1
      %p81 = scmp.ne.s32.totalorder %s76, %s78
      %p82 = scmp.eq.s32.totalorder %s21, 0
      %p83 = por %p81, %p82
      %p84 = scmp.ne.s32.totalorder %s76, %s78
      %p85 = scmp.eq.s32.totalorder %s26, 1
      %p86 = por %p84, %p85
      %p87 = scmp.ne.s32.totalorder %s78, %s79
      %p88 = scmp.eq.s32.totalorder %s26, 0
      %p89 = por %p87, %p88
      %p90 = scmp.ne.s32.totalorder %s78, %s79
      %p91 = scmp.eq.s32.totalorder %s27, 1
      %p92 = por %p90, %p91
      %p94 = scmp.ne.s32.totalorder %s79, %s93
      %p95 = scmp.eq.s32.totalorder %s27, 0
      %p96 = por %p94, %p95
      %s97 = ssub.s32 %s21, %s28
      %p98 = scmp.eq.s32.totalorder %s97, 0
      %s100 = sadd.s32 %s99, 1
      %s101 = scalar_select %p98, %s99, %s100
      %p104 = pneg %p98
      %p105 = scmp.eq.s32.totalorder %s21, 1
      %p106 = por %p104, %p105
      %p107 = scmp.ne.s32.totalorder %s99, %s102
      %p108 = scmp.eq.s32.totalorder %s21, 0
      %p109 = por %p107, %p108
      %p110 = scmp.ne.s32.totalorder %s99, %s102
      %p111 = scmp.eq.s32.totalorder %s26, 1
      %p112 = por %p110, %p111
      %p113 = scmp.ne.s32.totalorder %s102, %s103
      %p114 = scmp.eq.s32.totalorder %s26, 0
      %p115 = por %p113, %p114
      %p116 = scmp.ne.s32.totalorder %s102, %s103
      %p117 = scmp.eq.s32.totalorder %s27, 1
      %p118 = por %p116, %p117
      %p120 = scmp.ne.s32.totalorder %s103, %s119
      %p121 = scmp.eq.s32.totalorder %s27, 0
      %p122 = por %p120, %p121
      %s124 = sadd.s32 %s123, 1
      %p127 = scmp.eq.s32.totalorder %s21, 1
      %p128 = scmp.ne.s32.totalorder %s123, %s125
      %p129 = scmp.eq.s32.totalorder %s21, 0
      %p130 = por %p128, %p129
      %p131 = scmp.ne.s32.totalorder %s123, %s125
      %p132 = scmp.eq.s32.totalorder %s26, 1
      %p133 = por %p131, %p132
      %p134 = scmp.ne.s32.totalorder %s125, %s126
      %p135 = scmp.eq.s32.totalorder %s26, 0
      %p136 = por %p134, %p135
      %p137 = scmp.ne.s32.totalorder %s125, %s126
      %p138 = scmp.eq.s32.totalorder %s27, 1
      %p139 = por %p137, %p138
      %p141 = scmp.ne.s32.totalorder %s126, %s140
      %p142 = scmp.eq.s32.totalorder %s27, 0
      %p143 = por %p141, %p142
      %s145 = sadd.s32 %s144, 1
      %p148 = scmp.eq.s32.totalorder %s21, 1
      %p149 = scmp.ne.s32.totalorder %s144, %s146
      %p150 = scmp.eq.s32.totalorder %s21, 0
      %p151 = por %p149, %p150
      %p152 = scmp.ne.s32.totalorder %s144, %s146
      %p153 = scmp.eq.s32.totalorder %s26, 1
      %p154 = por %p152, %p153
      %p155 = scmp.ne.s32.totalorder %s146, %s147
      %p156 = scmp.eq.s32.totalorder %s26, 0
      %p157 = por %p155, %p156
      %p158 = scmp.ne.s32.totalorder %s146, %s147
      %p159 = scmp.eq.s32.totalorder %s27, 1
      %p160 = por %p158, %p159
      %p162 = scmp.ne.s32.totalorder %s147, %s161
      %p163 = scmp.eq.s32.totalorder %s27, 0
      %p164 = por %p162, %p163
      %s166 = sadd.s32 %s165, 1
      %p169 = scmp.eq.s32.totalorder %s21, 1
      %p170 = scmp.ne.s32.totalorder %s165, %s167
      %p171 = scmp.eq.s32.totalorder %s21, 0
      %p172 = por %p170, %p171
      %p173 = scmp.ne.s32.totalorder %s165, %s167
      %p174 = scmp.eq.s32.totalorder %s26, 1
      %p175 = por %p173, %p174
      %p176 = scmp.ne.s32.totalorder %s167, %s168
      %p177 = scmp.eq.s32.totalorder %s26, 0
      %p178 = por %p176, %p177
      %p179 = scmp.ne.s32.totalorder %s167, %s168
      %p180 = scmp.eq.s32.totalorder %s27, 1
      %p181 = por %p179, %p180
      %p183 = scmp.ne.s32.totalorder %s168, %s182
      %p184 = scmp.eq.s32.totalorder %s27, 0
      %p185 = por %p183, %p184
      %s187 = sadd.s32 %s186, 1
      %p190 = scmp.eq.s32.totalorder %s21, 1
      %p191 = scmp.ne.s32.totalorder %s186, %s188
      %p192 = scmp.eq.s32.totalorder %s21, 0
      %p193 = por %p191, %p192
      %p194 = scmp.ne.s32.totalorder %s186, %s188
      %p195 = scmp.eq.s32.totalorder %s26, 1
      %p196 = por %p194, %p195
      %p197 = scmp.ne.s32.totalorder %s188, %s189
      %p198 = scmp.eq.s32.totalorder %s26, 0
      %p199 = por %p197, %p198
      %p200 = scmp.ne.s32.totalorder %s188, %s189
      %p201 = scmp.eq.s32.totalorder %s27, 1
      %p202 = por %p200, %p201
      %p204 = scmp.ne.s32.totalorder %s189, %s203
      %p205 = scmp.eq.s32.totalorder %s27, 0
      %p206 = por %p204, %p205
      %s208 = sadd.s32 %s207, 1
      %p211 = scmp.eq.s32.totalorder %s21, 1
      %p212 = scmp.ne.s32.totalorder %s207, %s209
      %p213 = scmp.eq.s32.totalorder %s21, 0
      %p214 = por %p212, %p213
      %p215 = scmp.ne.s32.totalorder %s207, %s209
      %p216 = scmp.eq.s32.totalorder %s26, 1
      %p217 = por %p215, %p216
      %p218 = scmp.ne.s32.totalorder %s209, %s210
      %p219 = scmp.eq.s32.totalorder %s26, 0
      %p220 = por %p218, %p219
      %p221 = scmp.ne.s32.totalorder %s209, %s210
      %p222 = scmp.eq.s32.totalorder %s27, 1
      %p223 = por %p221, %p222
      %p225 = scmp.ne.s32.totalorder %s210, %s224
      %p226 = scmp.eq.s32.totalorder %s27, 0
      %p227 = por %p225, %p226
      %s229 = sadd.s32 %s228, 1
      %p232 = scmp.eq.s32.totalorder %s21, 1
      %p233 = scmp.ne.s32.totalorder %s228, %s230
      %p234 = scmp.eq.s32.totalorder %s21, 0
      %p235 = por %p233, %p234
      %p236 = scmp.ne.s32.totalorder %s228, %s230
      %p237 = scmp.eq.s32.totalorder %s26, 1
      %p238 = por %p236, %p237
      %p239 = scmp.ne.s32.totalorder %s230, %s231
      %p240 = scmp.eq.s32.totalorder %s26, 0
      %p241 = por %p239, %p240
      %p242 = scmp.ne.s32.totalorder %s230, %s231
      %p243 = scmp.eq.s32.totalorder %s27, 1
      %p244 = por %p242, %p243
      %p246 = scmp.ne.s32.totalorder %s231, %s245
      %p247 = scmp.eq.s32.totalorder %s27, 0
      %p248 = por %p246, %p247
      %s249 = ssub.s32 %s21, %s28
      %p250 = scmp.eq.s32.totalorder %s249, 0
      %s252 = sadd.s32 %s251, 1
      %s253 = scalar_select %p250, %s251, %s252
      %p256 = pneg %p250
      %p257 = scmp.eq.s32.totalorder %s21, 1
      %p258 = por %p256, %p257
      %p259 = scmp.ne.s32.totalorder %s251, %s254
      %p260 = scmp.eq.s32.totalorder %s21, 0
      %p261 = por %p259, %p260
      %p262 = scmp.ne.s32.totalorder %s251, %s254
      %p263 = scmp.eq.s32.totalorder %s26, 1
      %p264 = por %p262, %p263
      %p265 = scmp.ne.s32.totalorder %s254, %s255
      %p266 = scmp.eq.s32.totalorder %s26, 0
      %p267 = por %p265, %p266
      %p268 = scmp.ne.s32.totalorder %s254, %s255
      %p269 = scmp.eq.s32.totalorder %s27, 1
      %p270 = por %p268, %p269
      %p272 = scmp.ne.s32.totalorder %s255, %s271
      %p273 = scmp.eq.s32.totalorder %s27, 0
      %p274 = por %p272, %p273
      %p275 = scmp.le.s32.totalorder 1, %s21
      %p276 = scmp.lt.s32.totalorder %s21, 3
      %p277 = pnand %p275, %p276
      %p278 = pneg %p277
      // Predicated region
      $region9: #{tpu_custom_call.1} parent=5 // pred_check
        _
      $region10: #{tpu_custom_call.1} parent=5 // pred_check_branch
        %280 = sbr.rel (%p277) target = $region12
      $region11: #{tpu_custom_call.1} parent=5 // pred_region
        %s281 = ssub.s32 %s21, 1
        // Predicated region
        $region13: #{tpu_custom_call.1} parent=11 // pred_check
          %p282 = pneg %p68
        $region14: #{tpu_custom_call.1} parent=11 // pred_check_branch
          %284 = sbr.rel (%p282) target = $region16
        $region15: #{tpu_custom_call.1} parent=11 // pred_region
          _
        $region16: #{tpu_custom_call.1} parent=11 // pred_fallthru
          _
        // Predicated region
        $region17: #{tpu_custom_call.1} parent=11 // pred_check
          %p285 = pneg %p89
        $region18: #{tpu_custom_call.1} parent=11 // pred_check_branch
          %287 = sbr.rel (%p285) target = $region20
        $region19: #{tpu_custom_call.1} parent=11 // pred_region
          _
        $region20: #{tpu_custom_call.1} parent=11 // pred_fallthru
          _
        // Predicated region
        $region21: #{tpu_custom_call.1} parent=11 // pred_check
          %p288 = pneg %p136
        $region22: #{tpu_custom_call.1} parent=11 // pred_check_branch
          %290 = sbr.rel (%p288) target = $region24
        $region23: #{tpu_custom_call.1} parent=11 // pred_region
          %s292 = ssub.s32 3072, 3072
          %293 = vsyncadd [#allocation3], %s292
          %s294 = sshll.u32 [#allocation2], 4
          %s295 = int_to_ptr.vmem [resolvable:$true] %s294
          %300 = dma.hbm_to_vmem [thread:$0]  %s4, 3072, %s295, [#allocation3], 64, 64, 4
        $region24: #{tpu_custom_call.1} parent=11 // pred_fallthru
          _
        // Predicated region
        $region25: #{tpu_custom_call.1} parent=11 // pred_check
          %p301 = pneg %p157
        $region26: #{tpu_custom_call.1} parent=11 // pred_check_branch
          %303 = sbr.rel (%p301) target = $region28
        $region27: #{tpu_custom_call.1} parent=11 // pred_region
          _
        $region28: #{tpu_custom_call.1} parent=11 // pred_fallthru
          _
        // Predicated region
        $region29: #{tpu_custom_call.1} parent=11 // pred_check
          %p304 = pneg %p178
        $region30: #{tpu_custom_call.1} parent=11 // pred_check_branch
          %306 = sbr.rel (%p304) target = $region32
        $region31: #{tpu_custom_call.1} parent=11 // pred_region
          _
        $region32: #{tpu_custom_call.1} parent=11 // pred_fallthru
          _
        // Predicated region
        $region33: #{tpu_custom_call.1} parent=11 // pred_check
          %p307 = pneg %p199
        $region34: #{tpu_custom_call.1} parent=11 // pred_check_branch
          %309 = sbr.rel (%p307) target = $region36
        $region35: #{tpu_custom_call.1} parent=11 // pred_region
          %s311 = ssub.s32 3072, 3072
          %312 = vsyncadd [#allocation6], %s311
          %s313 = sshll.u32 [#allocation5], 4
          %s314 = int_to_ptr.vmem [resolvable:$true] %s313
          %319 = dma.hbm_to_vmem [thread:$0]  %s7, 3072, %s314, [#allocation6], 64, 64, 4
        $region36: #{tpu_custom_call.1} parent=11 // pred_fallthru
          _
        // Predicated region
        $region37: #{tpu_custom_call.1} parent=11 // pred_check
          %p320 = pneg %p220
        $region38: #{tpu_custom_call.1} parent=11 // pred_check_branch
          %322 = sbr.rel (%p320) target = $region40
        $region39: #{tpu_custom_call.1} parent=11 // pred_region
          _
        $region40: #{tpu_custom_call.1} parent=11 // pred_fallthru
          _
        // Predicated region
        $region41: #{tpu_custom_call.1} parent=11 // pred_check
          %p323 = pneg %p241
        $region42: #{tpu_custom_call.1} parent=11 // pred_check_branch
          %325 = sbr.rel (%p323) target = $region44
        $region43: #{tpu_custom_call.1} parent=11 // pred_region
          _
        $region44: #{tpu_custom_call.1} parent=11 // pred_fallthru
          _
      $region12: #{tpu_custom_call.1} parent=5 // pred_fallthru
        _
      %p326 = scmp.lt.s32.totalorder %s21, 2
      // Predicated region
      $region45: #{tpu_custom_call.1} parent=5 // pred_check
        %p327 = pneg %p326
      $region46: #{tpu_custom_call.1} parent=5 // pred_check_branch
        %329 = sbr.rel (%p327) target = $region48
      $region47: #{tpu_custom_call.1} parent=5 // pred_region
        // Predicated region
        $region49: #{tpu_custom_call.1} parent=47 // pred_check
          %p330 = pneg %p41
        $region50: #{tpu_custom_call.1} parent=47 // pred_check_branch
          %332 = sbr.rel (%p330) target = $region52
        $region51: #{tpu_custom_call.1} parent=47 // pred_region
          %p333 = scmp.lt.s32.totalorder %s21, 1
          %s334 = scalar_select %p333, %s21, 1
          %s335 = smul.addr %s334, 2
          %s336 = smul.addr %s335, 4
          %s337 = scalar_lea.vmem %s0, %s336
        $region52: #{tpu_custom_call.1} parent=47 // pred_fallthru
          _
        // Predicated region
        $region53: #{tpu_custom_call.1} parent=47 // pred_check
          %p338 = pneg %p109
        $region54: #{tpu_custom_call.1} parent=47 // pred_check_branch
          %340 = sbr.rel (%p338) target = $region56
        $region55: #{tpu_custom_call.1} parent=47 // pred_region
          %p341 = scmp.lt.s32.totalorder %s21, 1
          %s342 = scalar_select %p341, %s21, 1
          %s343 = smul.addr %s342, 3
          %s344 = smul.addr %s343, 4
          %s345 = scalar_lea.vmem %s3, %s344
        $region56: #{tpu_custom_call.1} parent=47 // pred_fallthru
          _
      $region48: #{tpu_custom_call.1} parent=5 // pred_fallthru
        _
      %p346 = scmp.le.s32.totalorder 1, %s21
      %p347 = scmp.lt.s32.totalorder %s21, 3
      %p348 = pnand %p346, %p347
      %p349 = pneg %p348
      // Predicated region
      $region57: #{tpu_custom_call.1} parent=5 // pred_check
        _
      $region58: #{tpu_custom_call.1} parent=5 // pred_check_branch
        %351 = sbr.rel (%p348) target = $region60
      $region59: #{tpu_custom_call.1} parent=5 // pred_region
        %s352 = ssub.s32 %s21, 1
        // Predicated region
        $region61: #{tpu_custom_call.1} parent=59 // pred_check
          %p353 = pneg %p136
        $region62: #{tpu_custom_call.1} parent=59 // pred_check_branch
          %355 = sbr.rel (%p353) target = $region64
        $region63: #{tpu_custom_call.1} parent=59 // pred_region
          %356 = dma.done [#allocation3], 3072
        $region64: #{tpu_custom_call.1} parent=59 // pred_fallthru
          _
        // Predicated region
        $region65: #{tpu_custom_call.1} parent=59 // pred_check
          %p357 = pneg %p199
        $region66: #{tpu_custom_call.1} parent=59 // pred_check_branch
          %359 = sbr.rel (%p357) target = $region68
        $region67: #{tpu_custom_call.1} parent=59 // pred_region
          %360 = dma.done [#allocation6], 3072
        $region68: #{tpu_custom_call.1} parent=59 // pred_fallthru
          _
        %p361 = scmp.lt.s32.totalorder %s26, 1
        %s362 = scalar_select %p361, %s26, 1
        %s363 = smul.addr %s362, 2
        %s364 = smul.addr %s363, 4
        %s365 = scalar_lea.vmem %s0, %s364
        %p366 = pneg %p47
        %p367 = pneg %p44
        %p368 = pneg %p68
        %p369 = pneg %p65
        %p370 = pneg %p89
        %p371 = pneg %p86
        %p372 = scmp.lt.s32.totalorder %s26, 1
        %s373 = scalar_select %p372, %s26, 1
        %s374 = smul.addr %s373, 3
        %s375 = smul.addr %s374, 4
        %s376 = scalar_lea.vmem %s3, %s375
        %p377 = pneg %p115
        %p378 = pneg %p112
        %p379 = pneg %p136
        %p380 = pneg %p133
        %p381 = pneg %p157
        %p382 = pneg %p154
        %p383 = pneg %p178
        %p384 = pneg %p175
        %p385 = pneg %p199
        %p386 = pneg %p196
        %p387 = pneg %p220
        %p388 = pneg %p217
        %p389 = pneg %p241
        %p390 = pneg %p238
        %p391 = pneg %p267
        %p392 = pneg %p264
        %s393 = sand.u32 %s254, 1
        %s394 = scalar_lea.sflag [#allocation4], %s393
        %s395 = sand.u32 %s254, 1
        %s396 = smul.addr %s395, 16
        %s397 = scalar_lea.vmem [#allocation7], %s396
        %p398 = scmp.lt.s32.totalorder %s26, 1
        %s399 = scalar_select %p398, %s26, 1
        %s400 = smul.addr %s399, 2
        %s401 = smul.addr %s400, 4
        %s402 = scalar_lea.vmem %s0, %s401
        %p403 = scmp.lt.s32.totalorder %s26, 1
        %s404 = scalar_select %p403, %s26, 1
        %s405 = smul.addr %s404, 3
        %s406 = smul.addr %s405, 4
        %s407 = scalar_lea.vmem %s3, %s406
        %v409 = vld [vmem:[%s402] sm:$0xf]
        %v410 = vld [vmem:[%s402 + $0x4] sm:$0xf]
        %v411 = vld [vmem:[%s1] sm:$0xf]
        %v412 = vld [vmem:[%s1 + $0x4] sm:$0xf]
        %v413 = vld [vmem:[%s1 + $0x8] sm:$0xf]
        %v414 = vld [vmem:[%s1 + $0xc] sm:$0xf]
        %v415 = vld [vmem:[%s1 + $0x10] sm:$0xf]
        %v416 = vld [vmem:[%s1 + $0x14] sm:$0xf]
        %v417 = vld [vmem:[%s1 + $0x18] sm:$0xf]
        %v418 = vld [vmem:[%s1 + $0x1c] sm:$0xf]
        %v419 = vld [vmem:[%s1 + $0x20] sm:$0xf]
        %v420 = vld [vmem:[%s1 + $0x24] sm:$0xf]
        %v421 = vld [vmem:[%s1 + $0x28] sm:$0xf]
        %v422 = vld [vmem:[%s1 + $0x2c] sm:$0xf]
        %v423 = vld [vmem:[%s1 + $0x30] sm:$0xf]
        %v424 = vld [vmem:[%s1 + $0x34] sm:$0xf]
        %v425 = vld [vmem:[%s1 + $0x38] sm:$0xf]
        %v426 = vld [vmem:[%s1 + $0x3c] sm:$0xf]
        %v427 = vld [vmem:[%s2] sm:$0x1]
        %v429 = vlaneseq
        %v430 = vshrl.u32 %v429, 7
        %v431 = vsub.s32 0, %v430
        %v432 = vrot.slane %v427, %v431
        %v436 = vunpack.c.l.b16 %v409
        %v437 = vunpack.c.l.b16 %v410
        %v438 = vpack.c.b16 %v437, %v436
        %v456 = vunpack.c.l.b16 %v411
        %v457 = vunpack.c.l.b16 %v412
        %v458 = vunpack.c.l.b16 %v413
        %v459 = vunpack.c.l.b16 %v414
        %v460 = vunpack.c.l.b16 %v415
        %v461 = vunpack.c.l.b16 %v416
        %v462 = vunpack.c.l.b16 %v417
        %v463 = vunpack.c.l.b16 %v418
        %v464 = vunpack.c.l.b16 %v419
        %v465 = vunpack.c.l.b16 %v420
        %v466 = vunpack.c.l.b16 %v421
        %v467 = vunpack.c.l.b16 %v422
        %v468 = vunpack.c.l.b16 %v423
        %v469 = vunpack.c.l.b16 %v424
        %v470 = vunpack.c.l.b16 %v425
        %v471 = vunpack.c.l.b16 %v426
        %v472 = vpack.c.b16 %v457, %v456
        %v473 = vpack.c.b16 %v459, %v458
        %v474 = vpack.c.b16 %v461, %v460
        %v475 = vpack.c.b16 %v463, %v462
        %v476 = vpack.c.b16 %v465, %v464
        %v477 = vpack.c.b16 %v467, %v466
        %v478 = vpack.c.b16 %v469, %v468
        %v479 = vpack.c.b16 %v471, %v470
        %488 = vmatprep.subr.bf16.mxu0 0
        %489 = vmatpush1.bf16.msra.mxu0 %v472
        %490 = vmatprep.subr.bf16.mxu0 0
        %491 = vmatpush1.bf16.msra.mxu0 %v473
        %492 = vmatprep.subr.bf16.mxu0 0
        %493 = vmatpush1.bf16.msra.mxu0 %v474
        %494 = vmatprep.subr.bf16.mxu0 0
        %495 = vmatpush1.bf16.msra.mxu0 %v475
        %496 = vmatprep.subr.bf16.mxu0 0
        %497 = vmatpush1.bf16.msra.mxu0 %v476
        %498 = vmatprep.subr.bf16.mxu0 0
        %499 = vmatpush1.bf16.msra.mxu0 %v477
        %500 = vmatprep.subr.bf16.mxu0 0
        %501 = vmatpush1.bf16.msra.mxu0 %v478
        %502 = vmatprep.subr.bf16.mxu0 0
        %503 = vmatpush1.bf16.msra.mxu0 %v479
        %504 = vmatprep.subr.bf16.mxu0 0
        %505 = vmatpush1.bf16.msra.mxu0 0
        %506 = vmatprep.subr.bf16.mxu0 0
        %507 = vmatpush1.bf16.msra.mxu0 0
        %508 = vmatprep.subr.bf16.mxu0 0
        %509 = vmatpush1.bf16.msra.mxu0 0
        %510 = vmatprep.subr.bf16.mxu0 0
        %511 = vmatpush1.bf16.msra.mxu0 0
        %512 = vmatprep.subr.bf16.mxu0 0
        %513 = vmatpush1.bf16.msra.mxu0 0
        %514 = vmatprep.subr.bf16.mxu0 0
        %515 = vmatpush1.bf16.msra.mxu0 0
        %516 = vmatprep.subr.bf16.mxu0 0
        %517 = vmatpush1.bf16.msra.mxu0 0
        %518 = vmatprep.subr.bf16.mxu0 0
        %519 = vmatpush1.bf16.msra.mxu0 0
        %520 = vmatprep.mubr.bf16.mxu0 0
        %521 = vmatmul.mubr.bf16.gmra.mrb[0].mxu0 %v438
        %v522 = vpop.f32.mrb[0].mxu0
        %v523 = vadd.f32 %v432, %v522
        %v524 = vpop.f32.mrb[0].mxu0
        %v525 = vpop.f32.mrb[0].mxu0
        %v526 = vadd.f32 %v432, %v525
        %v527 = vpop.f32.mrb[0].mxu0
        %528 = vdwg.mxu0
        %v529 = vpack.c.bf16 %v526, %v523
        %v531 = vshrl.u32 %v529, 16
        %v533 = vrot.slane %v531, 7
        %v534 = vshll.u32 %v529, 16
        %v536 = vor.u32 %v533, %v534
        %vm539 = vcmask 1040384
        %vm540 = vsmask.f32 256
        %vm541 = vmand %vm539, %vm540
        %v542 = vsel %vm541, 0, %v536
        %v543 = vsel %vm541, %v533, 0
        %v544 = vld [vmem:[%s407] sm:$0xf]
        %v545 = vld [vmem:[%s407 + $0x4] sm:$0xf]
        %v546 = vld [vmem:[%s407 + $0x8] sm:$0x1]
        %v550 = vunpack.c.l.b16 %v544
        %v551 = vunpack.c.l.b16 %v545
        %v552 = vunpack.c.l.b16 %v546
        %v553 = vpack.c.b16 %v551, %v550
        %v554 = vpack.c.b16 %v552, %v552
        %557 = vrot.lane.b32.xlu0 %v542, 64
        %v558 = vpop.permute.xlu0 %557
        %559 = vrot.lane.b32.xlu0 %v543, 64
        %v560 = vpop.permute.xlu0 %559
        %vm561 = vcmask 523264
        %v564 = vsel %vm561, %v553, %v558
        %v568 = vsel %vm561, %v554, %v560
        %vm569 = vsmask.f32 7424
        %v570 = vshrl.u32 %v564, 16
        %v572 = vshll.u32 %v564, 16
        %v574 = vrot.slane %v572, 1
        %v575 = vor.u32 %v570, %v574
        %v576 = vshll.u32 %v568, 16
        %v578 = vrot.slane %v576, 1
        %v579 = vsel %vm569, %v575, %v578
        %vm583 = vcmask 1046528
        %v584 = vrot.slane %v564, 1
        %v585 = vrot.slane %v568, 1
        %v586 = vsel %vm583, %v584, %v585
        %v588 = vld [vmem:[#allocation2] sm:$0xf]
        %v589 = vld [vmem:[#allocation2 + $0x4] sm:$0xf]
        %v590 = vld [vmem:[#allocation2 + $0x8] sm:$0xf]
        %v591 = vld [vmem:[#allocation2 + $0xc] sm:$0xf]
        %v592 = vld [vmem:[#allocation2 + $0x10] sm:$0xf]
        %v593 = vld [vmem:[#allocation2 + $0x14] sm:$0xf]
        %v594 = vld [vmem:[#allocation2 + $0x18] sm:$0xf]
        %v595 = vld [vmem:[#allocation2 + $0x1c] sm:$0xf]
        %v596 = vld [vmem:[#allocation2 + $0x20] sm:$0xf]
        %v597 = vld [vmem:[#allocation2 + $0x24] sm:$0xf]
        %v598 = vld [vmem:[#allocation2 + $0x28] sm:$0xf]
        %v599 = vld [vmem:[#allocation2 + $0x2c] sm:$0xf]
        %v600 = vld [vmem:[#allocation2 + $0x30] sm:$0xf]
        %v601 = vld [vmem:[#allocation2 + $0x34] sm:$0xf]
        %v602 = vld [vmem:[#allocation2 + $0x38] sm:$0xf]
        %v603 = vld [vmem:[#allocation2 + $0x3c] sm:$0xf]
        %v604 = vld [vmem:[#allocation2 + $0x40] sm:$0xf]
        %v605 = vld [vmem:[#allocation2 + $0x44] sm:$0xf]
        %v606 = vld [vmem:[#allocation2 + $0x48] sm:$0xf]
        %v607 = vld [vmem:[#allocation2 + $0x4c] sm:$0xf]
        %v608 = vld [vmem:[#allocation2 + $0x50] sm:$0xf]
        %v609 = vld [vmem:[#allocation2 + $0x54] sm:$0xf]
        %v610 = vld [vmem:[#allocation2 + $0x58] sm:$0xf]
        %v611 = vld [vmem:[#allocation2 + $0x5c] sm:$0xf]
        %v612 = vld [vmem:[#allocation2 + $0x60] sm:$0xf]
        %v613 = vld [vmem:[#allocation2 + $0x64] sm:$0xf]
        %v614 = vld [vmem:[#allocation2 + $0x68] sm:$0xf]
        %v615 = vld [vmem:[#allocation2 + $0x6c] sm:$0xf]
        %v616 = vld [vmem:[#allocation2 + $0x70] sm:$0xf]
        %v617 = vld [vmem:[#allocation2 + $0x74] sm:$0xf]
        %v618 = vld [vmem:[#allocation2 + $0x78] sm:$0xf]
        %v619 = vld [vmem:[#allocation2 + $0x7c] sm:$0xf]
        %v620 = vld [vmem:[#allocation2 + $0x80] sm:$0xf]
        %v621 = vld [vmem:[#allocation2 + $0x84] sm:$0xf]
        %v622 = vld [vmem:[#allocation2 + $0x88] sm:$0xf]
        %v623 = vld [vmem:[#allocation2 + $0x8c] sm:$0xf]
        %v624 = vld [vmem:[#allocation2 + $0x90] sm:$0xf]
        %v625 = vld [vmem:[#allocation2 + $0x94] sm:$0xf]
        %v626 = vld [vmem:[#allocation2 + $0x98] sm:$0xf]
        %v627 = vld [vmem:[#allocation2 + $0x9c] sm:$0xf]
        %v628 = vld [vmem:[#allocation2 + $0xa0] sm:$0xf]
        %v629 = vld [vmem:[#allocation2 + $0xa4] sm:$0xf]
        %v630 = vld [vmem:[#allocation2 + $0xa8] sm:$0xf]
        %v631 = vld [vmem:[#allocation2 + $0xac] sm:$0xf]
        %v632 = vld [vmem:[#allocation2 + $0xb0] sm:$0xf]
        %v633 = vld [vmem:[#allocation2 + $0xb4] sm:$0xf]
        %v634 = vld [vmem:[#allocation2 + $0xb8] sm:$0xf]
        %v635 = vld [vmem:[#allocation2 + $0xbc] sm:$0xf]
        %v684 = vunpack.c.l.b16 %v588
        %v685 = vunpack.c.l.b16 %v589
        %v686 = vunpack.c.l.b16 %v590
        %v687 = vunpack.c.l.b16 %v591
        %v688 = vunpack.c.l.b16 %v592
        %v689 = vunpack.c.l.b16 %v593
        %v690 = vunpack.c.l.b16 %v594
        %v691 = vunpack.c.l.b16 %v595
        %v692 = vunpack.c.l.b16 %v596
        %v693 = vunpack.c.l.b16 %v597
        %v694 = vunpack.c.l.b16 %v598
        %v695 = vunpack.c.l.b16 %v599
        %v696 = vunpack.c.l.b16 %v600
        %v697 = vunpack.c.l.b16 %v601
        %v698 = vunpack.c.l.b16 %v602
        %v699 = vunpack.c.l.b16 %v603
        %v700 = vunpack.c.l.b16 %v604
        %v701 = vunpack.c.l.b16 %v605
        %v702 = vunpack.c.l.b16 %v606
        %v703 = vunpack.c.l.b16 %v607
        %v704 = vunpack.c.l.b16 %v608
        %v705 = vunpack.c.l.b16 %v609
        %v706 = vunpack.c.l.b16 %v610
        %v707 = vunpack.c.l.b16 %v611
        %v708 = vunpack.c.l.b16 %v612
        %v709 = vunpack.c.l.b16 %v613
        %v710 = vunpack.c.l.b16 %v614
        %v711 = vunpack.c.l.b16 %v615
        %v712 = vunpack.c.l.b16 %v616
        %v713 = vunpack.c.l.b16 %v617
        %v714 = vunpack.c.l.b16 %v618
        %v715 = vunpack.c.l.b16 %v619
        %v716 = vunpack.c.l.b16 %v620
        %v717 = vunpack.c.l.b16 %v621
        %v718 = vunpack.c.l.b16 %v622
        %v719 = vunpack.c.l.b16 %v623
        %v720 = vunpack.c.l.b16 %v624
        %v721 = vunpack.c.l.b16 %v625
        %v722 = vunpack.c.l.b16 %v626
        %v723 = vunpack.c.l.b16 %v627
        %v724 = vunpack.c.l.b16 %v628
        %v725 = vunpack.c.l.b16 %v629
        %v726 = vunpack.c.l.b16 %v630
        %v727 = vunpack.c.l.b16 %v631
        %v728 = vunpack.c.l.b16 %v632
        %v729 = vunpack.c.l.b16 %v633
        %v730 = vunpack.c.l.b16 %v634
        %v731 = vunpack.c.l.b16 %v635
        %v732 = vpack.c.b16 %v685, %v684
        %v733 = vpack.c.b16 %v687, %v686
        %v734 = vpack.c.b16 %v689, %v688
        %v735 = vpack.c.b16 %v691, %v690
        %v736 = vpack.c.b16 %v693, %v692
        %v737 = vpack.c.b16 %v695, %v694
        %v738 = vpack.c.b16 %v697, %v696
        %v739 = vpack.c.b16 %v699, %v698
        %v740 = vpack.c.b16 %v701, %v700
        %v741 = vpack.c.b16 %v703, %v702
        %v742 = vpack.c.b16 %v705, %v704
        %v743 = vpack.c.b16 %v707, %v706
        %v744 = vpack.c.b16 %v709, %v708
        %v745 = vpack.c.b16 %v711, %v710
        %v746 = vpack.c.b16 %v713, %v712
        %v747 = vpack.c.b16 %v715, %v714
        %v748 = vpack.c.b16 %v717, %v716
        %v749 = vpack.c.b16 %v719, %v718
        %v750 = vpack.c.b16 %v721, %v720
        %v751 = vpack.c.b16 %v723, %v722
        %v752 = vpack.c.b16 %v725, %v724
        %v753 = vpack.c.b16 %v727, %v726
        %v754 = vpack.c.b16 %v729, %v728
        %v755 = vpack.c.b16 %v731, %v730
        %780 = vmatprep.subr.bf16.mxu0 0
        %781 = vmatpush1.bf16.msra.mxu0 %v732
        %782 = vmatprep.subr.bf16.mxu0 0
        %783 = vmatpush1.bf16.msra.mxu0 %v733
        %784 = vmatprep.subr.bf16.mxu0 0
        %785 = vmatpush1.bf16.msra.mxu0 %v734
        %786 = vmatprep.subr.bf16.mxu0 0
        %787 = vmatpush1.bf16.msra.mxu0 %v735
        %788 = vmatprep.subr.bf16.mxu0 0
        %789 = vmatpush1.bf16.msra.mxu0 %v736
        %790 = vmatprep.subr.bf16.mxu0 0
        %791 = vmatpush1.bf16.msra.mxu0 %v737
        %792 = vmatprep.subr.bf16.mxu0 0
        %793 = vmatpush1.bf16.msra.mxu0 %v738
        %794 = vmatprep.subr.bf16.mxu0 0
        %795 = vmatpush1.bf16.msra.mxu0 %v739
        %796 = vmatprep.subr.bf16.mxu0 0
        %797 = vmatpush1.bf16.msra.mxu0 %v740
        %798 = vmatprep.subr.bf16.mxu0 0
        %799 = vmatpush1.bf16.msra.mxu0 %v741
        %800 = vmatprep.subr.bf16.mxu0 0
        %801 = vmatpush1.bf16.msra.mxu0 %v742
        %802 = vmatprep.subr.bf16.mxu0 0
        %803 = vmatpush1.bf16.msra.mxu0 %v743
        %804 = vmatprep.subr.bf16.mxu0 0
        %805 = vmatpush1.bf16.msra.mxu0 %v744
        %806 = vmatprep.subr.bf16.mxu0 0
        %807 = vmatpush1.bf16.msra.mxu0 %v745
        %808 = vmatprep.subr.bf16.mxu0 0
        %809 = vmatpush1.bf16.msra.mxu0 %v746
        %810 = vmatprep.subr.bf16.mxu0 0
        %811 = vmatpush1.bf16.msra.mxu0 %v747
        %812 = vmatprep.mubr.bf16.mxu0 %v579
        %813 = vmatmul.mubr.bf16.gmra.mrb[0].mxu0 %v564
        %v814 = vpop.f32.mrb[0].mxu0
        %v815 = vadd.f32 0.0, %v814
        %v816 = vpop.f32.mrb[0].mxu0
        %v817 = vpop.f32.mrb[0].mxu0
        %v818 = vadd.f32 0.0, %v817
        %v819 = vpop.f32.mrb[0].mxu0
        %820 = vdwg.mxu0
        %821 = vmatprep.subr.bf16.mxu0 0
        %822 = vmatpush1.bf16.msra.mxu0 %v748
        %823 = vmatprep.subr.bf16.mxu0 0
        %824 = vmatpush1.bf16.msra.mxu0 %v749
        %825 = vmatprep.subr.bf16.mxu0 0
        %826 = vmatpush1.bf16.msra.mxu0 %v750
        %827 = vmatprep.subr.bf16.mxu0 0
        %828 = vmatpush1.bf16.msra.mxu0 %v751
        %829 = vmatprep.subr.bf16.mxu0 0
        %830 = vmatpush1.bf16.msra.mxu0 %v752
        %831 = vmatprep.subr.bf16.mxu0 0
        %832 = vmatpush1.bf16.msra.mxu0 %v753
        %833 = vmatprep.subr.bf16.mxu0 0
        %834 = vmatpush1.bf16.msra.mxu0 %v754
        %835 = vmatprep.subr.bf16.mxu0 0
        %836 = vmatpush1.bf16.msra.mxu0 %v755
        %837 = vmatprep.subr.bf16.mxu0 0
        %838 = vmatpush1.bf16.msra.mxu0 0
        %839 = vmatprep.subr.bf16.mxu0 0
        %840 = vmatpush1.bf16.msra.mxu0 0
        %841 = vmatprep.subr.bf16.mxu0 0
        %842 = vmatpush1.bf16.msra.mxu0 0
        %843 = vmatprep.subr.bf16.mxu0 0
        %844 = vmatpush1.bf16.msra.mxu0 0
        %845 = vmatprep.subr.bf16.mxu0 0
        %846 = vmatpush1.bf16.msra.mxu0 0
        %847 = vmatprep.subr.bf16.mxu0 0
        %848 = vmatpush1.bf16.msra.mxu0 0
        %849 = vmatprep.subr.bf16.mxu0 0
        %850 = vmatpush1.bf16.msra.mxu0 0
        %851 = vmatprep.subr.bf16.mxu0 0
        %852 = vmatpush1.bf16.msra.mxu0 0
        %853 = vmatprep.mubr.bf16.mxu0 0
        %854 = vmatmul.mubr.bf16.gmra.mrb[0].mxu0 %v586
        %v855 = vpop.f32.mrb[0].mxu0
        %v856 = vadd.f32 %v815, %v855
        %v857 = vpop.f32.mrb[0].mxu0
        %v858 = vpop.f32.mrb[0].mxu0
        %v859 = vadd.f32 %v818, %v858
        %v860 = vpop.f32.mrb[0].mxu0
        %861 = vdwg.mxu0
        %v862 = vld [vmem:[%s5] sm:$0x1]
        %v864 = vlaneseq
        %v865 = vshrl.u32 %v864, 7
        %v866 = vsub.s32 0, %v865
        %v867 = vrot.slane %v862, %v866
        %v869 = vmul.f32 %v856, %v867
        %v870 = vmul.f32 %v859, %v867
        %v871 = vld [vmem:[%s6] sm:$0x1]
        %v873 = vlaneseq
        %v874 = vshrl.u32 %v873, 7
        %v875 = vsub.s32 0, %v874
        %v876 = vrot.slane %v871, %v875
        %v878 = vadd.f32 %v869, %v876
        %v879 = vadd.f32 %v870, %v876
        %v880 = vmax.f32 %v878, 0.0
        %v881 = vmax.f32 %v879, 0.0
        %v882 = vpack.c.bf16 %v881, %v880
        %v884 = vshrl.u32 %v882, 16
        %v886 = vrot.slane %v884, 7
        %v887 = vshll.u32 %v882, 16
        %v889 = vor.u32 %v886, %v887
        %v892 = vsel %vm541, 0, %v889
        %v893 = vsel %vm541, %v886, 0
        %v895 = vshrl.u32 %v892, 16
        %v897 = vshll.u32 %v892, 16
        %v899 = vrot.slane %v897, 1
        %v900 = vor.u32 %v895, %v899
        %v902 = vshll.u32 %v893, 16
        %v904 = vrot.slane %v902, 1
        %v905 = vsel %vm569, %v900, %v904
        %v909 = vrot.slane %v892, 1
        %v910 = vrot.slane %v893, 1
        %v911 = vsel %vm583, %v909, %v910
        %v913 = vld [vmem:[#allocation5] sm:$0xf]
        %v914 = vld [vmem:[#allocation5 + $0x4] sm:$0xf]
        %v915 = vld [vmem:[#allocation5 + $0x8] sm:$0xf]
        %v916 = vld [vmem:[#allocation5 + $0xc] sm:$0xf]
        %v917 = vld [vmem:[#allocation5 + $0x10] sm:$0xf]
        %v918 = vld [vmem:[#allocation5 + $0x14] sm:$0xf]
        %v919 = vld [vmem:[#allocation5 + $0x18] sm:$0xf]
        %v920 = vld [vmem:[#allocation5 + $0x1c] sm:$0xf]
        %v921 = vld [vmem:[#allocation5 + $0x20] sm:$0xf]
        %v922 = vld [vmem:[#allocation5 + $0x24] sm:$0xf]
        %v923 = vld [vmem:[#allocation5 + $0x28] sm:$0xf]
        %v924 = vld [vmem:[#allocation5 + $0x2c] sm:$0xf]
        %v925 = vld [vmem:[#allocation5 + $0x30] sm:$0xf]
        %v926 = vld [vmem:[#allocation5 + $0x34] sm:$0xf]
        %v927 = vld [vmem:[#allocation5 + $0x38] sm:$0xf]
        %v928 = vld [vmem:[#allocation5 + $0x3c] sm:$0xf]
        %v929 = vld [vmem:[#allocation5 + $0x40] sm:$0xf]
        %v930 = vld [vmem:[#allocation5 + $0x44] sm:$0xf]
        %v931 = vld [vmem:[#allocation5 + $0x48] sm:$0xf]
        %v932 = vld [vmem:[#allocation5 + $0x4c] sm:$0xf]
        %v933 = vld [vmem:[#allocation5 + $0x50] sm:$0xf]
        %v934 = vld [vmem:[#allocation5 + $0x54] sm:$0xf]
        %v935 = vld [vmem:[#allocation5 + $0x58] sm:$0xf]
        %v936 = vld [vmem:[#allocation5 + $0x5c] sm:$0xf]
        %v937 = vld [vmem:[#allocation5 + $0x60] sm:$0xf]
        %v938 = vld [vmem:[#allocation5 + $0x64] sm:$0xf]
        %v939 = vld [vmem:[#allocation5 + $0x68] sm:$0xf]
        %v940 = vld [vmem:[#allocation5 + $0x6c] sm:$0xf]
        %v941 = vld [vmem:[#allocation5 + $0x70] sm:$0xf]
        %v942 = vld [vmem:[#allocation5 + $0x74] sm:$0xf]
        %v943 = vld [vmem:[#allocation5 + $0x78] sm:$0xf]
        %v944 = vld [vmem:[#allocation5 + $0x7c] sm:$0xf]
        %v945 = vld [vmem:[#allocation5 + $0x80] sm:$0xf]
        %v946 = vld [vmem:[#allocation5 + $0x84] sm:$0xf]
        %v947 = vld [vmem:[#allocation5 + $0x88] sm:$0xf]
        %v948 = vld [vmem:[#allocation5 + $0x8c] sm:$0xf]
        %v949 = vld [vmem:[#allocation5 + $0x90] sm:$0xf]
        %v950 = vld [vmem:[#allocation5 + $0x94] sm:$0xf]
        %v951 = vld [vmem:[#allocation5 + $0x98] sm:$0xf]
        %v952 = vld [vmem:[#allocation5 + $0x9c] sm:$0xf]
        %v953 = vld [vmem:[#allocation5 + $0xa0] sm:$0xf]
        %v954 = vld [vmem:[#allocation5 + $0xa4] sm:$0xf]
        %v955 = vld [vmem:[#allocation5 + $0xa8] sm:$0xf]
        %v956 = vld [vmem:[#allocation5 + $0xac] sm:$0xf]
        %v957 = vld [vmem:[#allocation5 + $0xb0] sm:$0xf]
        %v958 = vld [vmem:[#allocation5 + $0xb4] sm:$0xf]
        %v959 = vld [vmem:[#allocation5 + $0xb8] sm:$0xf]
        %v960 = vld [vmem:[#allocation5 + $0xbc] sm:$0xf]
        %v1009 = vunpack.c.l.b16 %v913
        %v1010 = vunpack.c.l.b16 %v914
        %v1011 = vunpack.c.l.b16 %v915
        %v1012 = vunpack.c.l.b16 %v916
        %v1013 = vunpack.c.l.b16 %v917
        %v1014 = vunpack.c.l.b16 %v918
        %v1015 = vunpack.c.l.b16 %v919
        %v1016 = vunpack.c.l.b16 %v920
        %v1017 = vunpack.c.l.b16 %v921
        %v1018 = vunpack.c.l.b16 %v922
        %v1019 = vunpack.c.l.b16 %v923
        %v1020 = vunpack.c.l.b16 %v924
        %v1021 = vunpack.c.l.b16 %v925
        %v1022 = vunpack.c.l.b16 %v926
        %v1023 = vunpack.c.l.b16 %v927
        %v1024 = vunpack.c.l.b16 %v928
        %v1025 = vunpack.c.l.b16 %v929
        %v1026 = vunpack.c.l.b16 %v930
        %v1027 = vunpack.c.l.b16 %v931
        %v1028 = vunpack.c.l.b16 %v932
        %v1029 = vunpack.c.l.b16 %v933
        %v1030 = vunpack.c.l.b16 %v934
        %v1031 = vunpack.c.l.b16 %v935
        %v1032 = vunpack.c.l.b16 %v936
        %v1033 = vunpack.c.l.b16 %v937
        %v1034 = vunpack.c.l.b16 %v938
        %v1035 = vunpack.c.l.b16 %v939
        %v1036 = vunpack.c.l.b16 %v940
        %v1037 = vunpack.c.l.b16 %v941
        %v1038 = vunpack.c.l.b16 %v942
        %v1039 = vunpack.c.l.b16 %v943
        %v1040 = vunpack.c.l.b16 %v944
        %v1041 = vunpack.c.l.b16 %v945
        %v1042 = vunpack.c.l.b16 %v946
        %v1043 = vunpack.c.l.b16 %v947
        %v1044 = vunpack.c.l.b16 %v948
        %v1045 = vunpack.c.l.b16 %v949
        %v1046 = vunpack.c.l.b16 %v950
        %v1047 = vunpack.c.l.b16 %v951
        %v1048 = vunpack.c.l.b16 %v952
        %v1049 = vunpack.c.l.b16 %v953
        %v1050 = vunpack.c.l.b16 %v954
        %v1051 = vunpack.c.l.b16 %v955
        %v1052 = vunpack.c.l.b16 %v956
        %v1053 = vunpack.c.l.b16 %v957
        %v1054 = vunpack.c.l.b16 %v958
        %v1055 = vunpack.c.l.b16 %v959
        %v1056 = vunpack.c.l.b16 %v960
        %v1057 = vpack.c.b16 %v1010, %v1009
        %v1058 = vpack.c.b16 %v1012, %v1011
        %v1059 = vpack.c.b16 %v1014, %v1013
        %v1060 = vpack.c.b16 %v1016, %v1015
        %v1061 = vpack.c.b16 %v1018, %v1017
        %v1062 = vpack.c.b16 %v1020, %v1019
        %v1063 = vpack.c.b16 %v1022, %v1021
        %v1064 = vpack.c.b16 %v1024, %v1023
        %v1065 = vpack.c.b16 %v1026, %v1025
        %v1066 = vpack.c.b16 %v1028, %v1027
        %v1067 = vpack.c.b16 %v1030, %v1029
        %v1068 = vpack.c.b16 %v1032, %v1031
        %v1069 = vpack.c.b16 %v1034, %v1033
        %v1070 = vpack.c.b16 %v1036, %v1035
        %v1071 = vpack.c.b16 %v1038, %v1037
        %v1072 = vpack.c.b16 %v1040, %v1039
        %v1073 = vpack.c.b16 %v1042, %v1041
        %v1074 = vpack.c.b16 %v1044, %v1043
        %v1075 = vpack.c.b16 %v1046, %v1045
        %v1076 = vpack.c.b16 %v1048, %v1047
        %v1077 = vpack.c.b16 %v1050, %v1049
        %v1078 = vpack.c.b16 %v1052, %v1051
        %v1079 = vpack.c.b16 %v1054, %v1053
        %v1080 = vpack.c.b16 %v1056, %v1055
        %1105 = vmatprep.subr.bf16.mxu0 0
        %1106 = vmatpush1.bf16.msra.mxu0 %v1057
        %1107 = vmatprep.subr.bf16.mxu0 0
        %1108 = vmatpush1.bf16.msra.mxu0 %v1058
        %1109 = vmatprep.subr.bf16.mxu0 0
        %1110 = vmatpush1.bf16.msra.mxu0 %v1059
        %1111 = vmatprep.subr.bf16.mxu0 0
        %1112 = vmatpush1.bf16.msra.mxu0 %v1060
        %1113 = vmatprep.subr.bf16.mxu0 0
        %1114 = vmatpush1.bf16.msra.mxu0 %v1061
        %1115 = vmatprep.subr.bf16.mxu0 0
        %1116 = vmatpush1.bf16.msra.mxu0 %v1062
        %1117 = vmatprep.subr.bf16.mxu0 0
        %1118 = vmatpush1.bf16.msra.mxu0 %v1063
        %1119 = vmatprep.subr.bf16.mxu0 0
        %1120 = vmatpush1.bf16.msra.mxu0 %v1064
        %1121 = vmatprep.subr.bf16.mxu0 0
        %1122 = vmatpush1.bf16.msra.mxu0 %v1065
        %1123 = vmatprep.subr.bf16.mxu0 0
        %1124 = vmatpush1.bf16.msra.mxu0 %v1066
        %1125 = vmatprep.subr.bf16.mxu0 0
        %1126 = vmatpush1.bf16.msra.mxu0 %v1067
        %1127 = vmatprep.subr.bf16.mxu0 0
        %1128 = vmatpush1.bf16.msra.mxu0 %v1068
        %1129 = vmatprep.subr.bf16.mxu0 0
        %1130 = vmatpush1.bf16.msra.mxu0 %v1069
        %1131 = vmatprep.subr.bf16.mxu0 0
        %1132 = vmatpush1.bf16.msra.mxu0 %v1070
        %1133 = vmatprep.subr.bf16.mxu0 0
        %1134 = vmatpush1.bf16.msra.mxu0 %v1071
        %1135 = vmatprep.subr.bf16.mxu0 0
        %1136 = vmatpush1.bf16.msra.mxu0 %v1072
        %1137 = vmatprep.mubr.bf16.mxu0 %v905
        %1138 = vmatmul.mubr.bf16.gmra.mrb[0].mxu0 %v892
        %v1139 = vpop.f32.mrb[0].mxu0
        %v1140 = vadd.f32 0.0, %v1139
        %v1141 = vpop.f32.mrb[0].mxu0
        %v1142 = vpop.f32.mrb[0].mxu0
        %v1143 = vadd.f32 0.0, %v1142
        %v1144 = vpop.f32.mrb[0].mxu0
        %1145 = vdwg.mxu0
        %1146 = vmatprep.subr.bf16.mxu0 0
        %1147 = vmatpush1.bf16.msra.mxu0 %v1073
        %1148 = vmatprep.subr.bf16.mxu0 0
        %1149 = vmatpush1.bf16.msra.mxu0 %v1074
        %1150 = vmatprep.subr.bf16.mxu0 0
        %1151 = vmatpush1.bf16.msra.mxu0 %v1075
        %1152 = vmatprep.subr.bf16.mxu0 0
        %1153 = vmatpush1.bf16.msra.mxu0 %v1076
        %1154 = vmatprep.subr.bf16.mxu0 0
        %1155 = vmatpush1.bf16.msra.mxu0 %v1077
        %1156 = vmatprep.subr.bf16.mxu0 0
        %1157 = vmatpush1.bf16.msra.mxu0 %v1078
        %1158 = vmatprep.subr.bf16.mxu0 0
        %1159 = vmatpush1.bf16.msra.mxu0 %v1079
        %1160 = vmatprep.subr.bf16.mxu0 0
        %1161 = vmatpush1.bf16.msra.mxu0 %v1080
        %1162 = vmatprep.subr.bf16.mxu0 0
        %1163 = vmatpush1.bf16.msra.mxu0 0
        %1164 = vmatprep.subr.bf16.mxu0 0
        %1165 = vmatpush1.bf16.msra.mxu0 0
        %1166 = vmatprep.subr.bf16.mxu0 0
        %1167 = vmatpush1.bf16.msra.mxu0 0
        %1168 = vmatprep.subr.bf16.mxu0 0
        %1169 = vmatpush1.bf16.msra.mxu0 0
        %1170 = vmatprep.subr.bf16.mxu0 0
        %1171 = vmatpush1.bf16.msra.mxu0 0
        %1172 = vmatprep.subr.bf16.mxu0 0
        %1173 = vmatpush1.bf16.msra.mxu0 0
        %1174 = vmatprep.subr.bf16.mxu0 0
        %1175 = vmatpush1.bf16.msra.mxu0 0
        %1176 = vmatprep.subr.bf16.mxu0 0
        %1177 = vmatpush1.bf16.msra.mxu0 0
        %1178 = vmatprep.mubr.bf16.mxu0 0
        %1179 = vmatmul.mubr.bf16.gmra.mrb[0].mxu0 %v911
        %v1180 = vpop.f32.mrb[0].mxu0
        %v1181 = vadd.f32 %v1140, %v1180
        %v1182 = vpop.f32.mrb[0].mxu0
        %v1183 = vpop.f32.mrb[0].mxu0
        %v1184 = vadd.f32 %v1143, %v1183
        %v1185 = vpop.f32.mrb[0].mxu0
        %1186 = vdwg.mxu0
        %v1187 = vld [vmem:[%s8] sm:$0x1]
        %v1189 = vlaneseq
        %v1190 = vshrl.u32 %v1189, 7
        %v1191 = vsub.s32 0, %v1190
        %v1192 = vrot.slane %v1187, %v1191
        %v1194 = vmul.f32 %v1181, %v1192
        %v1195 = vmul.f32 %v1184, %v1192
        %v1196 = vld [vmem:[%s9] sm:$0x1]
        %v1198 = vlaneseq
        %v1199 = vshrl.u32 %v1198, 7
        %v1200 = vsub.s32 0, %v1199
        %v1201 = vrot.slane %v1196, %v1200
        %v1203 = vadd.f32 %v1194, %v1201
        %v1204 = vadd.f32 %v1195, %v1201
        %v1205 = vmax.f32 %v1203, 0.0
        %v1206 = vmax.f32 %v1204, 0.0
        %1207 = vst [vmem:[%s397] sm:$0xff] %v1205
        %1208 = vst [vmem:[%s397 + $0x8] sm:$0xff] %v1206
        %s1209 = sand.u32 %s254, 1
        %s1210 = scalar_lea.sflag [#allocation4], %s1209
        %s1211 = sand.u32 %s254, 1
        %s1212 = smul.addr %s1211, 16
        %s1213 = scalar_lea.vmem [#allocation7], %s1212
        // Predicated region
        $region69: #{tpu_custom_call.1} parent=59 // pred_check
          %p1214 = pneg %p264
        $region70: #{tpu_custom_call.1} parent=59 // pred_check_branch
          %1216 = sbr.rel (%p1214) target = $region72
        $region71: #{tpu_custom_call.1} parent=59 // pred_region
          %s1218 = ssub.s32 256, 256
          %1219 = vsyncadd %s1210, %s1218
          %s1220 = smul.addr %s26, 2
          %s1221 = smul.addr %s1220, 128
          %s1222 = scalar_lea.hbm %s10, %s1221
          %s1223 = sshll.u32 %s1213, 4
          %s1224 = int_to_ptr.vmem [resolvable:$true] %s1223
          %1229 = dma.vmem_to_hbm [thread:$0]  %s1224, 256, %s1222, %s1210, 128, 128, 8
        $region72: #{tpu_custom_call.1} parent=59 // pred_fallthru
          _
      $region60: #{tpu_custom_call.1} parent=5 // pred_fallthru
        _
      %p1230 = scmp.le.s32.totalorder 2, %s21
      // Predicated region
      $region73: #{tpu_custom_call.1} parent=5 // pred_check
        %p1231 = pneg %p1230
      $region74: #{tpu_custom_call.1} parent=5 // pred_check_branch
        %1233 = sbr.rel (%p1231) target = $region76
      $region75: #{tpu_custom_call.1} parent=5 // pred_region
        %s1234 = ssub.s32 %s21, 2
        // Predicated region
        $region77: #{tpu_custom_call.1} parent=75 // pred_check
          %p1235 = pneg %p270
        $region78: #{tpu_custom_call.1} parent=75 // pred_check_branch
          %1237 = sbr.rel (%p1235) target = $region80
        $region79: #{tpu_custom_call.1} parent=75 // pred_region
          %s1238 = sand.u32 %s255, 1
          %s1239 = scalar_lea.sflag [#allocation4], %s1238
          %s1240 = sand.u32 %s255, 1
          %s1241 = smul.addr %s1240, 16
          %s1242 = scalar_lea.vmem [#allocation7], %s1241
          %1243 = dma.done %s1239, 256
        $region80: #{tpu_custom_call.1} parent=75 // pred_fallthru
          _
      $region76: #{tpu_custom_call.1} parent=5 // pred_fallthru
        _
    $region6: #{tpu_custom_call.1} parent=1 // loop_footer
      %s25 = sadd.s32 1, %s21
    $region7: #{tpu_custom_call.1} parent=1 // loop_footer_branch
      %20 = sbr.rel target = $region3
    $region8: #{tpu_custom_call.1} parent=1 // loop_exit
      _
    %1244 = vsyncpa [#allocation3], 1
    %s1245 = scalar_lea.sflag [#allocation3], 1
    %1246 = vsyncpa %s1245, 1
    %1247 = vsyncpa [#allocation6], 1
    %1248 = vsyncpa [#allocation4], 1
    %s1249 = scalar_lea.sflag [#allocation4], 1
    %1250 = vsyncpa %s1249, 1

</llo_original>
